<compile_context>
chip_gen: v5e
topology: v5e:2x2
jax: 0.10.0
libtpu: 0.0.40
codegen_flags: <defaults>
</compile_context>

<pallas_src>
import functools

import numpy as np
import jax
import jax.numpy as jnp
from jax import lax
from jax.experimental import pallas as pl
from jax.experimental.pallas import tpu as pltpu


# --------------------------------------------------------------------------- #
# In-kernel helpers                                                            #
# --------------------------------------------------------------------------- #
def _take_every_d(v, start, S, n):
    """Rows start, start+S, ..., start+(n-1)*S along axis 1 (a leading dim).

    Uses only contiguous slices + a leading-dim regrouping reshape + static
    index, so the (sublane, lane) tile layout is never touched.
    """
    if n == 1:
        return v[:, start:start + 1]
    if S == 1:
        return v[:, start:start + n]
    L = v.shape[1]
    lead, rest = v.shape[0], v.shape[2:]
    if start + n * S <= L:
        g = v[:, start:start + n * S].reshape(lead, n, S, *rest)
        return g[:, :, 0]
    # last group is incomplete: decimate the first n-1, append the final row
    g = v[:, start:start + (n - 1) * S].reshape(lead, n - 1, S, *rest)
    last = v[:, start + (n - 1) * S: start + (n - 1) * S + 1]
    return jnp.concatenate([g[:, :, 0], last], axis=1)


def _pool_minor(v, *, axis, K, S, pad, n_out):
    """Max-pool (window K, stride S, front zero-pad `pad`) along a minor axis.

    Unrolled over output positions: static contiguous slice + reduce over the
    axis + one concatenate — only ops with guaranteed Mosaic lowering on the
    sublane / lane axes.  Runs on the already D-(and H-)reduced array.
    """
    cols = []
    zshape = list(v.shape)
    zshape[axis] = 1
    zero = jnp.zeros((), v.dtype)
    for o in range(n_out):
        s0 = o * S - pad
        lo, hi = max(s0, 0), s0 + K
        if hi <= 0:  # window entirely inside the zero pad (only if K < S)
            cols.append(jnp.zeros(tuple(zshape), v.dtype))
            continue
        idx = [slice(None)] * v.ndim
        idx[axis] = slice(lo, hi)
        col = jnp.max(v[tuple(idx)], axis=axis, keepdims=True)
        if lo > s0:  # window overlaps the front zero pad -> 0 joins the max
            col = jnp.maximum(col, zero)
        cols.append(col)
    return cols[0] if n_out == 1 else jnp.concatenate(cols, axis=axis)


def _pool_kernel(x_ref, o_ref, *, K, S, pd, ph, pw, tDo, Ho, Wo):
    # x_ref: (cblk, tDin, H, W)   o_ref: (cblk, tDo, Ho, Wo)
    cblk, tDin = x_ref.shape[0], x_ref.shape[1]

    v = x_ref[...]  # one contiguous slab load per grid step

    # ---- D axis (leading dim 1): relayout-free ------------------------------
    if pd == 0 and K == S and tDin == tDo * S:
        # non-overlapping windows: free leading-dim regroup + K-1 element maxes
        g = v.reshape(cblk, tDo, S, *v.shape[2:])
        y = g[:, :, 0]
        for k in range(1, K):
            y = jnp.maximum(y, g[:, :, k])
    else:
        y = None
        for k in range(K):
            start = k - pd
            if start >= 0:
                tap = _take_every_d(v, start, S, tDo)
            elif tDo == 1:
                tap = v[:, 0:1]  # row 0 already belongs to output 0's window
            else:
                rest = _take_every_d(v, start + S, S, tDo - 1)
                # clamp output row 0 of this tap to input row 0 (harmless: it is
                # inside output 0's valid window); the pad-zero contribution is
                # added once below.
                tap = jnp.concatenate([v[:, 0:1], rest], axis=1)
            y = tap if y is None else jnp.maximum(y, tap)
        if pd > 0:
            # the front zero-pad joins the max, but only at output row 0
            row0 = lax.broadcasted_iota(jnp.int32, y.shape, 1) == 0
            y = jnp.where(row0, jnp.maximum(y, jnp.zeros((), y.dtype)), y)

    # ---- H axis (sublanes) then W axis (lanes), on the reduced array --------
    y = _pool_minor(y, axis=2, K=K, S=S, pad=ph, n_out=Ho)
    y = _pool_minor(y, axis=3, K=K, S=S, pad=pw, n_out=Wo)

    o_ref[...] = y  # single slab store per grid step


# --------------------------------------------------------------------------- #
# Block-size / VMEM selection (generation aware)                               #
# --------------------------------------------------------------------------- #
def _ceil_to(x, m):
    return -(-x // m) * m


def _pick_blocks(NC, D, H, W, Do, Ho, Wo, K, S, pd, itemsize):
    def blk_bytes(nc, d, h, w):
        # VMEM footprint of a (nc, d, h, w) block: minor dims pad to (8, 128)
        return nc * d * _ceil_to(h, 8) * _ceil_to(w, 128) * itemsize

    try:
        cap = int(getattr(pltpu.get_tpu_info(), "vmem_capacity_bytes", 64 * 2**20))
    except Exception:
        cap = 64 * 2**20
    budget = int(0.6 * cap)

    def need(nc, tdo, tdin):
        # double-buffered in/out blocks + live pooling temporaries (~2x input)
        return 4 * blk_bytes(nc, tdin, H, W) + 2 * blk_bytes(nc, tdo, Ho, Wo)

    # ---- Do blocking: only when output blocks map to non-overlapping,
    #      un-padded input row groups (K <= S and no front D pad). ------------
    can_block_d = (pd == 0) and (K <= S) and (Do > 1)
    if can_block_d:
        tdo = Do
        while tdo > 1 and need(1, tdo, tdo * S) > budget:
            tdo = -(-tdo // 2)
        tdin = tdo * S
        grid_d = -(-Do // tdo)
    else:
        # TODO(synk): K > S needs a (K-S)-row halo between D blocks; until then
        # the whole D extent is a single block when windows overlap or pd > 0.
        tdo, tdin, grid_d = Do, D, 1

    # ---- grow the flattened (N*C) block while it fits, blocks stay modest,
    #      and at least 2 grid steps remain (v7x has 2 TensorCores). ----------
    cblk = 1
    while cblk < NC:
        nxt = min(2 * cblk, NC)
        if need(nxt, tdo, tdin) > budget:
            break
        if blk_bytes(nxt, tdin, H, W) > (8 << 20):
            break
        if (-(-NC // nxt)) * grid_d < 2:
            break
        cblk = nxt
    grid_nc = -(-NC // cblk)

    vmem_limit = int(min(max(2 * need(cblk, tdo, tdin), 32 << 20), int(0.9 * cap)))
    return cblk, tdo, tdin, grid_nc, grid_d, vmem_limit


# --------------------------------------------------------------------------- #
# Public wrapper                                                               #
# --------------------------------------------------------------------------- #
def pad_max_pool3d(f_maps, kernel_size, stride, return_pad=False):
    """JAX/Pallas equivalent of PadMaxPool3d.forward with return_indices=False.

    f_maps: NCDHW array (PyTorch conv layout). dtype is preserved.
    """
    # TODO(synk): return_indices=True (MaxPool3d argmax flat indices) not implemented.
    N, C, D, H, W = f_maps.shape
    K, S = int(kernel_size), int(stride)
    pads = [S - dim % S for dim in (D, H, W)]
    pads = [0 if p == S else p for p in pads]
    pd, ph, pw = pads
    Do = (D + pd - K) // S + 1
    Ho = (H + ph - K) // S + 1
    Wo = (W + pw - K) // S + 1

    NC = N * C
    x = f_maps.reshape(NC, D, H, W)  # leading-dim merge: no data movement

    itemsize = jnp.dtype(f_maps.dtype).itemsize
    cblk, tdo, tdin, grid_nc, grid_d, vmem_limit = _pick_blocks(
        NC, D, H, W, Do, Ho, Wo, K, S, pd, itemsize)

    kern = functools.partial(
        _pool_kernel, K=K, S=S, pd=pd, ph=ph, pw=pw, tDo=tdo, Ho=Ho, Wo=Wo)

    out = pl.pallas_call(
        kern,
        out_shape=jax.ShapeDtypeStruct((NC, Do, Ho, Wo), f_maps.dtype),
        grid=(grid_nc, grid_d),
        in_specs=[pl.BlockSpec((cblk, tdin, H, W), lambda i, d: (i, d, 0, 0))],
        out_specs=pl.BlockSpec((cblk, tdo, Ho, Wo), lambda i, d: (i, d, 0, 0)),
        compiler_params=pltpu.CompilerParams(
            dimension_semantics=("parallel", "parallel"),
            vmem_limit_bytes=vmem_limit),
    )(x)

    out = out.reshape(N, C, Do, Ho, Wo)  # leading-dim split: no data movement
    pad_tuple = (pw, 0, ph, 0, pd, 0)
    if return_pad:
        return out, pad_tuple
    return out


# --------------------------------------------------------------------------- #
# Pure-JAX reference + self-check                                              #
# --------------------------------------------------------------------------- #
def _reference_pad_max_pool3d(f_maps, kernel_size, stride):
    """Zero-pad front/left of D/H/W, then VALID max pool (matches PyTorch)."""
    N, C, D, H, W = f_maps.shape
    coords = [stride - dim % stride for dim in (D, H, W)]
    coords = [0 if c == stride else c for c in coords]
    xp = jnp.pad(
        f_maps,
        ((0, 0), (0, 0), (coords[0], 0), (coords[1], 0), (coords[2], 0)),
        constant_values=0,
    )
    return lax.reduce_window(
        xp,
        -jnp.inf,
        lax.max,
        (1, 1, kernel_size, kernel_size, kernel_size),
        (1, 1, stride, stride, stride),
        "VALID",
    ).astype(f_maps.dtype)


if __name__ == "__main__":
    key = jax.random.PRNGKey(0)
    configs = [
        ((2, 4, 7, 6, 9), 2, 2),   # odd sizes -> front pad on D and W (typical use)
        ((1, 3, 8, 5, 7), 3, 2),   # overlapping windows (K > S) + pads on H, W
        ((2, 2, 6, 6, 6), 2, 2),   # no padding; exercises the Do-blocked fast path
    ]
    for i, (shape, K, S) in enumerate(configs):
        k = jax.random.fold_in(key, i)
        f_maps = jax.random.normal(k, shape, dtype=jnp.float32)
        out, pad = pad_max_pool3d(f_maps, K, S, return_pad=True)
        out = jax.block_until_ready(out)
        ref = _reference_pad_max_pool3d(f_maps, K, S)
        assert out.shape == ref.shape, (shape, out.shape, ref.shape)
        assert out.dtype == f_maps.dtype
        np.testing.assert_allclose(np.asarray(out), np.asarray(ref), rtol=0, atol=0)
        if i == 0:
            # D=7 -> pad 1 front, H=6 -> no pad, W=9 -> pad 1 left
            assert pad == (1, 0, 0, 0, 1, 0), pad

    print("KERNEL_OK")
</pallas_src>

<mosaic_0001>
module attributes {stable_mosaic.version = 11 : i64} {
  func.func @_pool_kernel(%arg0: i32, %arg1: i32, %arg2: memref<4x7x6x9xf32, #tpu.memory_space<vmem>>, %arg3: memref<4x4x3x5xf32, #tpu.memory_space<vmem>>) attributes {dimension_semantics = [#tpu.dimension_semantics<parallel>, #tpu.dimension_semantics<parallel>], iteration_bounds = array<i64: 2, 1>, scalar_prefetch = 0 : i64, scratch_operands = 0 : i64, tpu.core_type = #tpu.core_type<tc>, window_params = [{transform_indices = @transform_0, window_bounds = array<i64: 4, 7, 6, 9>}, {transform_indices = @transform_1, window_bounds = array<i64: 4, 4, 3, 5>}]} {
    %c0 = arith.constant 0 : index
    %c0_0 = arith.constant 0 : index
    %c0_1 = arith.constant 0 : index
    %c0_2 = arith.constant 0 : index
    %0 = vector.load %arg2[%c0, %c0_0, %c0_1, %c0_2] : memref<4x7x6x9xf32, #tpu.memory_space<vmem>>, vector<4x7x6x9xf32>
    %1 = vector.extract_strided_slice %0 {offsets = [0, 1, 0, 0], sizes = [4, 6, 6, 9], strides = [1, 1, 1, 1]} : vector<4x7x6x9xf32> to vector<4x6x6x9xf32>
    %2 = vector.shape_cast %1 : vector<4x6x6x9xf32> to vector<4x3x2x6x9xf32>
    %3 = vector.extract_strided_slice %2 {offsets = [0, 0, 0, 0, 0], sizes = [4, 3, 1, 6, 9], strides = [1, 1, 1, 1, 1]} : vector<4x3x2x6x9xf32> to vector<4x3x1x6x9xf32>
    %4 = vector.shape_cast %3 : vector<4x3x1x6x9xf32> to vector<4x3x6x9xf32>
    %5 = vector.extract_strided_slice %0 {offsets = [0, 0, 0, 0], sizes = [4, 1, 6, 9], strides = [1, 1, 1, 1]} : vector<4x7x6x9xf32> to vector<4x1x6x9xf32>
    %6 = tpu.concatenate %5, %4 in 1 : vector<4x1x6x9xf32>, vector<4x3x6x9xf32> -> vector<4x4x6x9xf32>
    %7 = vector.extract_strided_slice %0 {offsets = [0, 0, 0, 0], sizes = [4, 6, 6, 9], strides = [1, 1, 1, 1]} : vector<4x7x6x9xf32> to vector<4x6x6x9xf32>
    %8 = vector.shape_cast %7 : vector<4x6x6x9xf32> to vector<4x3x2x6x9xf32>
    %9 = vector.extract_strided_slice %0 {offsets = [0, 6, 0, 0], sizes = [4, 1, 6, 9], strides = [1, 1, 1, 1]} : vector<4x7x6x9xf32> to vector<4x1x6x9xf32>
    %10 = vector.extract_strided_slice %8 {offsets = [0, 0, 0, 0, 0], sizes = [4, 3, 1, 6, 9], strides = [1, 1, 1, 1, 1]} : vector<4x3x2x6x9xf32> to vector<4x3x1x6x9xf32>
    %11 = vector.shape_cast %10 : vector<4x3x1x6x9xf32> to vector<4x3x6x9xf32>
    %12 = tpu.concatenate %11, %9 in 1 : vector<4x3x6x9xf32>, vector<4x1x6x9xf32> -> vector<4x4x6x9xf32>
    %13 = arith.maximumf %6, %12 : vector<4x4x6x9xf32>
    %14 = tpu.iota {dimensions = array<i32: 1>} : vector<4x4x6x9xi32>
    %c0_i32 = arith.constant 0 : i32
    %15 = vector.broadcast %c0_i32 : i32 to vector<4x4x6x9xi32>
    %16 = arith.cmpi eq, %14, %15 : vector<4x4x6x9xi32>
    %cst = arith.constant 0.000000e+00 : f32
    %17 = vector.broadcast %cst : f32 to vector<4x4x6x9xf32>
    %18 = arith.maximumf %13, %17 : vector<4x4x6x9xf32>
    %19 = arith.select %16, %18, %13 : vector<4x4x6x9xi1>, vector<4x4x6x9xf32>
    %20 = vector.extract_strided_slice %19 {offsets = [0, 0, 0, 0], sizes = [4, 4, 2, 9], strides = [1, 1, 1, 1]} : vector<4x4x6x9xf32> to vector<4x4x2x9xf32>
    %cst_3 = arith.constant dense<0xFF800000> : vector<4x4x9xf32>
    %21 = vector.multi_reduction <maximumf>, %20, %cst_3 [2] : vector<4x4x2x9xf32> to vector<4x4x9xf32>
    %22 = vector.shape_cast %21 : vector<4x4x9xf32> to vector<4x4x1x9xf32>
    %23 = vector.extract_strided_slice %19 {offsets = [0, 0, 2, 0], sizes = [4, 4, 2, 9], strides = [1, 1, 1, 1]} : vector<4x4x6x9xf32> to vector<4x4x2x9xf32>
    %cst_4 = arith.constant dense<0xFF800000> : vector<4x4x9xf32>
    %24 = vector.multi_reduction <maximumf>, %23, %cst_4 [2] : vector<4x4x2x9xf32> to vector<4x4x9xf32>
    %25 = vector.shape_cast %24 : vector<4x4x9xf32> to vector<4x4x1x9xf32>
    %26 = vector.extract_strided_slice %19 {offsets = [0, 0, 4, 0], sizes = [4, 4, 2, 9], strides = [1, 1, 1, 1]} : vector<4x4x6x9xf32> to vector<4x4x2x9xf32>
    %cst_5 = arith.constant dense<0xFF800000> : vector<4x4x9xf32>
    %27 = vector.multi_reduction <maximumf>, %26, %cst_5 [2] : vector<4x4x2x9xf32> to vector<4x4x9xf32>
    %28 = vector.shape_cast %27 : vector<4x4x9xf32> to vector<4x4x1x9xf32>
    %29 = tpu.concatenate %22, %25, %28 in 2 : vector<4x4x1x9xf32>, vector<4x4x1x9xf32>, vector<4x4x1x9xf32> -> vector<4x4x3x9xf32>
    %30 = vector.extract_strided_slice %29 {offsets = [0, 0, 0, 0], sizes = [4, 4, 3, 1], strides = [1, 1, 1, 1]} : vector<4x4x3x9xf32> to vector<4x4x3x1xf32>
    %cst_6 = arith.constant dense<0xFF800000> : vector<4x4x3xf32>
    %31 = vector.multi_reduction <maximumf>, %30, %cst_6 [3] : vector<4x4x3x1xf32> to vector<4x4x3xf32>
    %32 = vector.shape_cast %31 : vector<4x4x3xf32> to vector<4x4x3x1xf32>
    %cst_7 = arith.constant 0.000000e+00 : f32
    %33 = vector.broadcast %cst_7 : f32 to vector<4x4x3x1xf32>
    %34 = arith.maximumf %32, %33 : vector<4x4x3x1xf32>
    %35 = vector.extract_strided_slice %29 {offsets = [0, 0, 0, 1], sizes = [4, 4, 3, 2], strides = [1, 1, 1, 1]} : vector<4x4x3x9xf32> to vector<4x4x3x2xf32>
    %cst_8 = arith.constant dense<0xFF800000> : vector<4x4x3xf32>
    %36 = vector.multi_reduction <maximumf>, %35, %cst_8 [3] : vector<4x4x3x2xf32> to vector<4x4x3xf32>
    %37 = vector.shape_cast %36 : vector<4x4x3xf32> to vector<4x4x3x1xf32>
    %38 = vector.extract_strided_slice %29 {offsets = [0, 0, 0, 3], sizes = [4, 4, 3, 2], strides = [1, 1, 1, 1]} : vector<4x4x3x9xf32> to vector<4x4x3x2xf32>
    %cst_9 = arith.constant dense<0xFF800000> : vector<4x4x3xf32>
    %39 = vector.multi_reduction <maximumf>, %38, %cst_9 [3] : vector<4x4x3x2xf32> to vector<4x4x3xf32>
    %40 = vector.shape_cast %39 : vector<4x4x3xf32> to vector<4x4x3x1xf32>
    %41 = vector.extract_strided_slice %29 {offsets = [0, 0, 0, 5], sizes = [4, 4, 3, 2], strides = [1, 1, 1, 1]} : vector<4x4x3x9xf32> to vector<4x4x3x2xf32>
    %cst_10 = arith.constant dense<0xFF800000> : vector<4x4x3xf32>
    %42 = vector.multi_reduction <maximumf>, %41, %cst_10 [3] : vector<4x4x3x2xf32> to vector<4x4x3xf32>
    %43 = vector.shape_cast %42 : vector<4x4x3xf32> to vector<4x4x3x1xf32>
    %44 = vector.extract_strided_slice %29 {offsets = [0, 0, 0, 7], sizes = [4, 4, 3, 2], strides = [1, 1, 1, 1]} : vector<4x4x3x9xf32> to vector<4x4x3x2xf32>
    %cst_11 = arith.constant dense<0xFF800000> : vector<4x4x3xf32>
    %45 = vector.multi_reduction <maximumf>, %44, %cst_11 [3] : vector<4x4x3x2xf32> to vector<4x4x3xf32>
    %46 = vector.shape_cast %45 : vector<4x4x3xf32> to vector<4x4x3x1xf32>
    %47 = tpu.concatenate %34, %37, %40, %43, %46 in 3 : vector<4x4x3x1xf32>, vector<4x4x3x1xf32>, vector<4x4x3x1xf32>, vector<4x4x3x1xf32>, vector<4x4x3x1xf32> -> vector<4x4x3x5xf32>
    %c0_12 = arith.constant 0 : index
    %c0_13 = arith.constant 0 : index
    %c0_14 = arith.constant 0 : index
    %c0_15 = arith.constant 0 : index
    %48 = vector.load %arg3[%c0_12, %c0_13, %c0_14, %c0_15] : memref<4x4x3x5xf32, #tpu.memory_space<vmem>>, vector<4x4x3x5xf32>
    tpu.vector_store %arg3[%c0_12, %c0_13, %c0_14, %c0_15], %47 {strides = array<i32>} : memref<4x4x3x5xf32, #tpu.memory_space<vmem>>, vector<4x4x3x5xf32>,
    return
  }
  func.func @transform_0(%arg0: i32, %arg1: i32) -> (i32, i32, i32, i32) {
    %c0_i32 = arith.constant 0 : i32
    %c0_i32_0 = arith.constant 0 : i32
    %c0_i32_1 = arith.constant 0 : i32
    return %arg0, %arg1, %c0_i32, %c0_i32_0 : i32, i32, i32, i32
  }
  func.func @transform_1(%arg0: i32, %arg1: i32) -> (i32, i32, i32, i32) {
    %c0_i32 = arith.constant 0 : i32
    %c0_i32_0 = arith.constant 0 : i32
    %c0_i32_1 = arith.constant 0 : i32
    return %arg0, %arg1, %c0_i32, %c0_i32_0 : i32, i32, i32, i32
  }
}

</mosaic_0001>

<llo_original>
// kernel: tpu_custom_call.1
$region0: #{tpu_custom_call.1}
  #allocation0 [shape = 'u32[]', space=smem, size = 0x4, offset = 0x4, fixed_abs, tag = 'smem constant byte address 0x4 - core index']
  #allocation1 [shape = 'u32[72,128]{1,0:T(1,128)}', space=vmem, size = 0x9000, scoped, tag = 'internal scratch']
  %s0 = inlined_call_operand.vmem [shape: f32[8,7,6,9], index: 0, kind: input, shape index: {}]
  %s1 = inlined_call_operand.vmem [shape: f32[8,4,3,5], index: 1, kind: output, shape index: {}]
  %s2 = sld [smem:[#allocation0]]
  $region37: #{tpu_custom_call.1} parent=0
    _
  %s4 = ssub.s32 1, %s2
  %s5 = scalar_select 0, %s4, %s2
  loop: start=0, step=1, limit=4
  $region2: #{tpu_custom_call.1} parent=0 // loop_pre_header
    _
  $region3: #{tpu_custom_call.1} parent=0 // loop_header
    %s7 = sphi 0, %s11
    %p8 = scmp.ge.s32.totalorder %s7, 4
    %s14 = sphi 0, %s26
    %s15 = sphi 0, %s22
    %s16 = sphi 0, %s14
    %s17 = sphi 0, %s15
    %s18 = sphi 0, %s16
    %s19 = sphi 0, %s17
    %s31 = sphi 0, %s33
    %s34 = sphi 0, %s31
    %s35 = sphi 0, %s34
    %s51 = sphi 0, %s35
    %s59 = sphi 0, %s61
    %s62 = sphi 0, %s59
    %s63 = sphi 0, %s62
    %s79 = sphi 0, %s63
  $region4: #{tpu_custom_call.1} parent=0 // loop_header_branch
    %10 = sbr.rel (%p8) target = $region8
  $region5: #{tpu_custom_call.1} parent=0 // loop_body
    %s12 = ssub.s32 %s7, 1
    %s13 = ssub.s32 %s7, 2
    %s20 = sadd.s32 1, %s15
    %p21 = scmp.ge.s32.totalorder %s20, 1
    %s22 = scalar_select %p21, 0, %s20
    %s23 = sadd.s32 1, %s14
    %s24 = scalar_select %p21, %s23, %s14
    %p25 = scmp.ge.s32.totalorder %s24, 2
    %s26 = scalar_select %p25, 0, %s24
    %s27 = ssub.s32 %s14, %s26
    %s28 = ssub.s32 %s15, %s22
    %s29 = sor.u32 %s27, %s28
    %p30 = scmp.eq.s32.totalorder %s29, 0
    %s32 = sadd.s32 %s31, 1
    %s33 = scalar_select %p30, %s31, %s32
    %p36 = pneg %p30
    %p37 = scmp.eq.s32.totalorder %s7, 1
    %p38 = por %p36, %p37
    %p39 = scmp.ne.s32.totalorder %s31, %s34
    %p40 = scmp.eq.s32.totalorder %s7, 0
    %p41 = por %p39, %p40
    %p42 = scmp.ne.s32.totalorder %s31, %s34
    %p43 = scmp.eq.s32.totalorder %s12, 1
    %p44 = por %p42, %p43
    %p45 = scmp.ne.s32.totalorder %s34, %s35
    %p46 = scmp.eq.s32.totalorder %s12, 0
    %p47 = por %p45, %p46
    %p48 = scmp.ne.s32.totalorder %s34, %s35
    %p49 = scmp.eq.s32.totalorder %s13, 1
    %p50 = por %p48, %p49
    %p52 = scmp.ne.s32.totalorder %s35, %s51
    %p53 = scmp.eq.s32.totalorder %s13, 0
    %p54 = por %p52, %p53
    %s55 = ssub.s32 %s14, %s26
    %s56 = ssub.s32 %s15, %s22
    %s57 = sor.u32 %s55, %s56
    %p58 = scmp.eq.s32.totalorder %s57, 0
    %s60 = sadd.s32 %s59, 1
    %s61 = scalar_select %p58, %s59, %s60
    %p64 = pneg %p58
    %p65 = scmp.eq.s32.totalorder %s7, 1
    %p66 = por %p64, %p65
    %p67 = scmp.ne.s32.totalorder %s59, %s62
    %p68 = scmp.eq.s32.totalorder %s7, 0
    %p69 = por %p67, %p68
    %p70 = scmp.ne.s32.totalorder %s59, %s62
    %p71 = scmp.eq.s32.totalorder %s12, 1
    %p72 = por %p70, %p71
    %p73 = scmp.ne.s32.totalorder %s62, %s63
    %p74 = scmp.eq.s32.totalorder %s12, 0
    %p75 = por %p73, %p74
    %p76 = scmp.ne.s32.totalorder %s62, %s63
    %p77 = scmp.eq.s32.totalorder %s13, 1
    %p78 = por %p76, %p77
    %p80 = scmp.ne.s32.totalorder %s63, %s79
    %p81 = scmp.eq.s32.totalorder %s13, 0
    %p82 = por %p80, %p81
    %p83 = scmp.le.s32.totalorder 1, %s7
    %p84 = scmp.lt.s32.totalorder %s7, 3
    %p85 = pnand %p83, %p84
    %p86 = pneg %p85
    // Predicated region
    $region9: #{tpu_custom_call.1} parent=5 // pred_check
      _
    $region10: #{tpu_custom_call.1} parent=5 // pred_check_branch
      %88 = sbr.rel (%p85) target = $region12
    $region11: #{tpu_custom_call.1} parent=5 // pred_region
      %s89 = ssub.s32 %s7, 1
    $region12: #{tpu_custom_call.1} parent=5 // pred_fallthru
      _
    %p90 = scmp.lt.s32.totalorder %s7, 2
    // Predicated region
    $region13: #{tpu_custom_call.1} parent=5 // pred_check
      %p91 = pneg %p90
    $region14: #{tpu_custom_call.1} parent=5 // pred_check_branch
      %93 = sbr.rel (%p91) target = $region16
    $region15: #{tpu_custom_call.1} parent=5 // pred_region
      // Predicated region
      $region17: #{tpu_custom_call.1} parent=15 // pred_check
        %p94 = pneg %p41
      $region18: #{tpu_custom_call.1} parent=15 // pred_check_branch
        %96 = sbr.rel (%p94) target = $region20
      $region19: #{tpu_custom_call.1} parent=15 // pred_region
        %s97 = smul.u32 4, %s14
        %s98 = smul.u32 7, %s15
        %p99 = scmp.lt.s32.totalorder %s97, 7
        %s100 = scalar_select %p99, %s97, 7
        %p101 = scmp.lt.s32.totalorder %s98, 6
        %s102 = scalar_select %p101, %s98, 6
        %s103 = smul.addr %s100, 7
        %s104 = sadd.s32 %s102, %s103
        %s105 = smul.addr %s104, 8
        %s106 = scalar_lea.vmem %s0, %s105
        %s107 = smul.u32 4, %s14
        %s108 = smul.u32 7, %s15
      $region20: #{tpu_custom_call.1} parent=15 // pred_fallthru
        _
    $region16: #{tpu_custom_call.1} parent=5 // pred_fallthru
      _
    %p109 = scmp.le.s32.totalorder 1, %s7
    %p110 = scmp.lt.s32.totalorder %s7, 3
    %p111 = pnand %p109, %p110
    %p112 = pneg %p111
    // Predicated region
    $region21: #{tpu_custom_call.1} parent=5 // pred_check
      _
    $region22: #{tpu_custom_call.1} parent=5 // pred_check_branch
      %114 = sbr.rel (%p111) target = $region24
    $region23: #{tpu_custom_call.1} parent=5 // pred_region
      %s115 = ssub.s32 %s7, 1
      %s116 = smul.u32 4, %s16
      %s117 = smul.u32 7, %s17
      %p118 = scmp.lt.s32.totalorder %s116, 7
      %s119 = scalar_select %p118, %s116, 7
      %p120 = scmp.lt.s32.totalorder %s117, 6
      %s121 = scalar_select %p120, %s117, 6
      %s122 = smul.addr %s119, 7
      %s123 = sadd.s32 %s121, %s122
      %s124 = smul.addr %s123, 8
      %s125 = scalar_lea.vmem %s0, %s124
      %p126 = pneg %p47
      %p127 = pneg %p44
      %p128 = pneg %p75
      %p129 = pneg %p72
      %s130 = smul.u32 4, %s16
      %s131 = smul.u32 4, %s17
      %p132 = scmp.lt.s32.totalorder %s130, 7
      %s133 = scalar_select %p132, %s130, 7
      %p134 = scmp.lt.s32.totalorder %s131, 3
      %s135 = scalar_select %p134, %s131, 3
      %s136 = smul.addr %s133, 4
      %s137 = sadd.s32 %s135, %s136
      %s138 = smul.addr %s137, 4
      %s139 = scalar_lea.vmem %s1, %s138
      %s140 = smul.u32 4, %s16
      %s141 = smul.u32 7, %s17
      %p142 = scmp.lt.s32.totalorder %s140, 7
      %s143 = scalar_select %p142, %s140, 7
      %p144 = scmp.lt.s32.totalorder %s141, 6
      %s145 = scalar_select %p144, %s141, 6
      %s146 = smul.addr %s143, 7
      %s147 = sadd.s32 %s145, %s146
      %s148 = smul.addr %s147, 8
      %s149 = scalar_lea.vmem %s0, %s148
      %s150 = smul.u32 4, %s16
      %s151 = smul.u32 7, %s17
      %s152 = smul.u32 4, %s16
      %s153 = smul.u32 4, %s17
      %p154 = scmp.lt.s32.totalorder %s152, 7
      %s155 = scalar_select %p154, %s152, 7
      %p156 = scmp.lt.s32.totalorder %s153, 3
      %s157 = scalar_select %p156, %s153, 3
      %s158 = smul.addr %s155, 4
      %s159 = sadd.s32 %s157, %s158
      %s160 = smul.addr %s159, 4
      %s161 = scalar_lea.vmem %s1, %s160
      %s162 = smul.u32 4, %s16
      %s163 = smul.u32 4, %s17
      %v164 = vld [vmem:[%s149] sm:$0x3f]
      %v165 = vld [vmem:[%s149 + $0x8] sm:$0x3f]
      %v166 = vld [vmem:[%s149 + $0x10] sm:$0x3f]
      %v167 = vld [vmem:[%s149 + $0x18] sm:$0x3f]
      %v168 = vld [vmem:[%s149 + $0x20] sm:$0x3f]
      %v169 = vld [vmem:[%s149 + $0x28] sm:$0x3f]
      %v170 = vld [vmem:[%s149 + $0x30] sm:$0x3f]
      %v171 = vld [vmem:[%s149 + $0x38] sm:$0x3f]
      %v172 = vld [vmem:[%s149 + $0x40] sm:$0x3f]
      %v173 = vld [vmem:[%s149 + $0x48] sm:$0x3f]
      %v174 = vld [vmem:[%s149 + $0x50] sm:$0x3f]
      %v175 = vld [vmem:[%s149 + $0x58] sm:$0x3f]
      %v176 = vld [vmem:[%s149 + $0x60] sm:$0x3f]
      %v177 = vld [vmem:[%s149 + $0x68] sm:$0x3f]
      %v178 = vld [vmem:[%s149 + $0x70] sm:$0x3f]
      %v179 = vld [vmem:[%s149 + $0x78] sm:$0x3f]
      %v180 = vld [vmem:[%s149 + $0x80] sm:$0x3f]
      %v181 = vld [vmem:[%s149 + $0x88] sm:$0x3f]
      %v182 = vld [vmem:[%s149 + $0x90] sm:$0x3f]
      %v183 = vld [vmem:[%s149 + $0x98] sm:$0x3f]
      %v184 = vld [vmem:[%s149 + $0xa0] sm:$0x3f]
      %v185 = vld [vmem:[%s149 + $0xa8] sm:$0x3f]
      %v186 = vld [vmem:[%s149 + $0xb0] sm:$0x3f]
      %v187 = vld [vmem:[%s149 + $0xb8] sm:$0x3f]
      %v188 = vld [vmem:[%s149 + $0xc0] sm:$0x3f]
      %v189 = vld [vmem:[%s149 + $0xc8] sm:$0x3f]
      %v190 = vld [vmem:[%s149 + $0xd0] sm:$0x3f]
      %v191 = vld [vmem:[%s149 + $0xd8] sm:$0x3f]
      %v192 = vmax.f32 %v165, %v166
      %v193 = vmax.f32 %v167, %v168
      %v194 = vmax.f32 %v169, %v170
      %v195 = vmax.f32 %v172, %v173
      %v196 = vmax.f32 %v174, %v175
      %v197 = vmax.f32 %v176, %v177
      %v198 = vmax.f32 %v179, %v180
      %v199 = vmax.f32 %v181, %v182
      %v200 = vmax.f32 %v183, %v184
      %v201 = vmax.f32 %v186, %v187
      %v202 = vmax.f32 %v188, %v189
      %v203 = vmax.f32 %v190, %v191
      %v204 = vmax.f32 %v164, 0.0
      %v205 = vmax.f32 %v192, 0.0
      %v206 = vmax.f32 %v193, 0.0
      %v207 = vmax.f32 %v194, 0.0
      %v208 = vmax.f32 %v171, 0.0
      %v209 = vmax.f32 %v195, 0.0
      %v210 = vmax.f32 %v196, 0.0
      %v211 = vmax.f32 %v197, 0.0
      %v212 = vmax.f32 %v178, 0.0
      %v213 = vmax.f32 %v198, 0.0
      %v214 = vmax.f32 %v199, 0.0
      %v215 = vmax.f32 %v200, 0.0
      %v216 = vmax.f32 %v185, 0.0
      %v217 = vmax.f32 %v201, 0.0
      %v218 = vmax.f32 %v202, 0.0
      %v219 = vmax.f32 %v203, 0.0
      %v220 = vsel 1, %v204, %v164
      %v221 = vsel 0, %v205, %v192
      %v222 = vsel 0, %v206, %v193
      %v223 = vsel 0, %v207, %v194
      %v224 = vsel 1, %v208, %v171
      %v225 = vsel 0, %v209, %v195
      %v226 = vsel 0, %v210, %v196
      %v227 = vsel 0, %v211, %v197
      %v228 = vsel 1, %v212, %v178
      %v229 = vsel 0, %v213, %v198
      %v230 = vsel 0, %v214, %v199
      %v231 = vsel 0, %v215, %v200
      %v232 = vsel 1, %v216, %v185
      %v233 = vsel 0, %v217, %v201
      %v234 = vsel 0, %v218, %v202
      %v235 = vsel 0, %v219, %v203
      %vm236 = vcmask 66560
      %v237 = vsel %vm236, %v220, -inf
      %v238 = vrot.slane %v237, 4
      %v239 = vmax.f32 %v237, %v238
      %v240 = vrot.slane %v239, 2
      %v241 = vmax.f32 %v239, %v240
      %v242 = vrot.slane %v241, 1
      %v243 = vmax.f32 %v241, %v242
      %v244 = vsel %vm236, %v221, -inf
      %v245 = vrot.slane %v244, 4
      %v246 = vmax.f32 %v244, %v245
      %v247 = vrot.slane %v246, 2
      %v248 = vmax.f32 %v246, %v247
      %v249 = vrot.slane %v248, 1
      %v250 = vmax.f32 %v248, %v249
      %v251 = vsel %vm236, %v222, -inf
      %v252 = vrot.slane %v251, 4
      %v253 = vmax.f32 %v251, %v252
      %v254 = vrot.slane %v253, 2
      %v255 = vmax.f32 %v253, %v254
      %v256 = vrot.slane %v255, 1
      %v257 = vmax.f32 %v255, %v256
      %v258 = vsel %vm236, %v223, -inf
      %v259 = vrot.slane %v258, 4
      %v260 = vmax.f32 %v258, %v259
      %v261 = vrot.slane %v260, 2
      %v262 = vmax.f32 %v260, %v261
      %v263 = vrot.slane %v262, 1
      %v264 = vmax.f32 %v262, %v263
      %v265 = vsel %vm236, %v224, -inf
      %v266 = vrot.slane %v265, 4
      %v267 = vmax.f32 %v265, %v266
      %v268 = vrot.slane %v267, 2
      %v269 = vmax.f32 %v267, %v268
      %v270 = vrot.slane %v269, 1
      %v271 = vmax.f32 %v269, %v270
      %v272 = vsel %vm236, %v225, -inf
      %v273 = vrot.slane %v272, 4
      %v274 = vmax.f32 %v272, %v273
      %v275 = vrot.slane %v274, 2
      %v276 = vmax.f32 %v274, %v275
      %v277 = vrot.slane %v276, 1
      %v278 = vmax.f32 %v276, %v277
      %v279 = vsel %vm236, %v226, -inf
      %v280 = vrot.slane %v279, 4
      %v281 = vmax.f32 %v279, %v280
      %v282 = vrot.slane %v281, 2
      %v283 = vmax.f32 %v281, %v282
      %v284 = vrot.slane %v283, 1
      %v285 = vmax.f32 %v283, %v284
      %v286 = vsel %vm236, %v227, -inf
      %v287 = vrot.slane %v286, 4
      %v288 = vmax.f32 %v286, %v287
      %v289 = vrot.slane %v288, 2
      %v290 = vmax.f32 %v288, %v289
      %v291 = vrot.slane %v290, 1
      %v292 = vmax.f32 %v290, %v291
      %v293 = vsel %vm236, %v228, -inf
      %v294 = vrot.slane %v293, 4
      %v295 = vmax.f32 %v293, %v294
      %v296 = vrot.slane %v295, 2
      %v297 = vmax.f32 %v295, %v296
      %v298 = vrot.slane %v297, 1
      %v299 = vmax.f32 %v297, %v298
      %v300 = vsel %vm236, %v229, -inf
      %v301 = vrot.slane %v300, 4
      %v302 = vmax.f32 %v300, %v301
      %v303 = vrot.slane %v302, 2
      %v304 = vmax.f32 %v302, %v303
      %v305 = vrot.slane %v304, 1
      %v306 = vmax.f32 %v304, %v305
      %v307 = vsel %vm236, %v230, -inf
      %v308 = vrot.slane %v307, 4
      %v309 = vmax.f32 %v307, %v308
      %v310 = vrot.slane %v309, 2
      %v311 = vmax.f32 %v309, %v310
      %v312 = vrot.slane %v311, 1
      %v313 = vmax.f32 %v311, %v312
      %v314 = vsel %vm236, %v231, -inf
      %v315 = vrot.slane %v314, 4
      %v316 = vmax.f32 %v314, %v315
      %v317 = vrot.slane %v316, 2
      %v318 = vmax.f32 %v316, %v317
      %v319 = vrot.slane %v318, 1
      %v320 = vmax.f32 %v318, %v319
      %v321 = vsel %vm236, %v232, -inf
      %v322 = vrot.slane %v321, 4
      %v323 = vmax.f32 %v321, %v322
      %v324 = vrot.slane %v323, 2
      %v325 = vmax.f32 %v323, %v324
      %v326 = vrot.slane %v325, 1
      %v327 = vmax.f32 %v325, %v326
      %v328 = vsel %vm236, %v233, -inf
      %v329 = vrot.slane %v328, 4
      %v330 = vmax.f32 %v328, %v329
      %v331 = vrot.slane %v330, 2
      %v332 = vmax.f32 %v330, %v331
      %v333 = vrot.slane %v332, 1
      %v334 = vmax.f32 %v332, %v333
      %v335 = vsel %vm236, %v234, -inf
      %v336 = vrot.slane %v335, 4
      %v337 = vmax.f32 %v335, %v336
      %v338 = vrot.slane %v337, 2
      %v339 = vmax.f32 %v337, %v338
      %v340 = vrot.slane %v339, 1
      %v341 = vmax.f32 %v339, %v340
      %v342 = vsel %vm236, %v235, -inf
      %v343 = vrot.slane %v342, 4
      %v344 = vmax.f32 %v342, %v343
      %v345 = vrot.slane %v344, 2
      %v346 = vmax.f32 %v344, %v345
      %v347 = vrot.slane %v346, 1
      %v348 = vmax.f32 %v346, %v347
      %vm349 = vcmask 68610
      %v350 = vsel %vm349, %v220, -inf
      %v351 = vrot.slane %v350, 4
      %v352 = vmax.f32 %v350, %v351
      %v353 = vrot.slane %v352, 2
      %v354 = vmax.f32 %v352, %v353
      %v355 = vrot.slane %v354, 1
      %v356 = vmax.f32 %v354, %v355
      %v357 = vsel %vm349, %v221, -inf
      %v358 = vrot.slane %v357, 4
      %v359 = vmax.f32 %v357, %v358
      %v360 = vrot.slane %v359, 2
      %v361 = vmax.f32 %v359, %v360
      %v362 = vrot.slane %v361, 1
      %v363 = vmax.f32 %v361, %v362
      %v364 = vsel %vm349, %v222, -inf
      %v365 = vrot.slane %v364, 4
      %v366 = vmax.f32 %v364, %v365
      %v367 = vrot.slane %v366, 2
      %v368 = vmax.f32 %v366, %v367
      %v369 = vrot.slane %v368, 1
      %v370 = vmax.f32 %v368, %v369
      %v371 = vsel %vm349, %v223, -inf
      %v372 = vrot.slane %v371, 4
      %v373 = vmax.f32 %v371, %v372
      %v374 = vrot.slane %v373, 2
      %v375 = vmax.f32 %v373, %v374
      %v376 = vrot.slane %v375, 1
      %v377 = vmax.f32 %v375, %v376
      %v378 = vsel %vm349, %v224, -inf
      %v379 = vrot.slane %v378, 4
      %v380 = vmax.f32 %v378, %v379
      %v381 = vrot.slane %v380, 2
      %v382 = vmax.f32 %v380, %v381
      %v383 = vrot.slane %v382, 1
      %v384 = vmax.f32 %v382, %v383
      %v385 = vsel %vm349, %v225, -inf
      %v386 = vrot.slane %v385, 4
      %v387 = vmax.f32 %v385, %v386
      %v388 = vrot.slane %v387, 2
      %v389 = vmax.f32 %v387, %v388
      %v390 = vrot.slane %v389, 1
      %v391 = vmax.f32 %v389, %v390
      %v392 = vsel %vm349, %v226, -inf
      %v393 = vrot.slane %v392, 4
      %v394 = vmax.f32 %v392, %v393
      %v395 = vrot.slane %v394, 2
      %v396 = vmax.f32 %v394, %v395
      %v397 = vrot.slane %v396, 1
      %v398 = vmax.f32 %v396, %v397
      %v399 = vsel %vm349, %v227, -inf
      %v400 = vrot.slane %v399, 4
      %v401 = vmax.f32 %v399, %v400
      %v402 = vrot.slane %v401, 2
      %v403 = vmax.f32 %v401, %v402
      %v404 = vrot.slane %v403, 1
      %v405 = vmax.f32 %v403, %v404
      %v406 = vsel %vm349, %v228, -inf
      %v407 = vrot.slane %v406, 4
      %v408 = vmax.f32 %v406, %v407
      %v409 = vrot.slane %v408, 2
      %v410 = vmax.f32 %v408, %v409
      %v411 = vrot.slane %v410, 1
      %v412 = vmax.f32 %v410, %v411
      %v413 = vsel %vm349, %v229, -inf
      %v414 = vrot.slane %v413, 4
      %v415 = vmax.f32 %v413, %v414
      %v416 = vrot.slane %v415, 2
      %v417 = vmax.f32 %v415, %v416
      %v418 = vrot.slane %v417, 1
      %v419 = vmax.f32 %v417, %v418
      %v420 = vsel %vm349, %v230, -inf
      %v421 = vrot.slane %v420, 4
      %v422 = vmax.f32 %v420, %v421
      %v423 = vrot.slane %v422, 2
      %v424 = vmax.f32 %v422, %v423
      %v425 = vrot.slane %v424, 1
      %v426 = vmax.f32 %v424, %v425
      %v427 = vsel %vm349, %v231, -inf
      %v428 = vrot.slane %v427, 4
      %v429 = vmax.f32 %v427, %v428
      %v430 = vrot.slane %v429, 2
      %v431 = vmax.f32 %v429, %v430
      %v432 = vrot.slane %v431, 1
      %v433 = vmax.f32 %v431, %v432
      %v434 = vsel %vm349, %v232, -inf
      %v435 = vrot.slane %v434, 4
      %v436 = vmax.f32 %v434, %v435
      %v437 = vrot.slane %v436, 2
      %v438 = vmax.f32 %v436, %v437
      %v439 = vrot.slane %v438, 1
      %v440 = vmax.f32 %v438, %v439
      %v441 = vsel %vm349, %v233, -inf
      %v442 = vrot.slane %v441, 4
      %v443 = vmax.f32 %v441, %v442
      %v444 = vrot.slane %v443, 2
      %v445 = vmax.f32 %v443, %v444
      %v446 = vrot.slane %v445, 1
      %v447 = vmax.f32 %v445, %v446
      %v448 = vsel %vm349, %v234, -inf
      %v449 = vrot.slane %v448, 4
      %v450 = vmax.f32 %v448, %v449
      %v451 = vrot.slane %v450, 2
      %v452 = vmax.f32 %v450, %v451
      %v453 = vrot.slane %v452, 1
      %v454 = vmax.f32 %v452, %v453
      %v455 = vsel %vm349, %v235, -inf
      %v456 = vrot.slane %v455, 4
      %v457 = vmax.f32 %v455, %v456
      %v458 = vrot.slane %v457, 2
      %v459 = vmax.f32 %v457, %v458
      %v460 = vrot.slane %v459, 1
      %v461 = vmax.f32 %v459, %v460
      %vm462 = vcmask 70660
      %v463 = vsel %vm462, %v220, -inf
      %v464 = vrot.slane %v463, 4
      %v465 = vmax.f32 %v463, %v464
      %v466 = vrot.slane %v465, 2
      %v467 = vmax.f32 %v465, %v466
      %v468 = vrot.slane %v467, 1
      %v469 = vmax.f32 %v467, %v468
      %v470 = vsel %vm462, %v221, -inf
      %v471 = vrot.slane %v470, 4
      %v472 = vmax.f32 %v470, %v471
      %v473 = vrot.slane %v472, 2
      %v474 = vmax.f32 %v472, %v473
      %v475 = vrot.slane %v474, 1
      %v476 = vmax.f32 %v474, %v475
      %v477 = vsel %vm462, %v222, -inf
      %v478 = vrot.slane %v477, 4
      %v479 = vmax.f32 %v477, %v478
      %v480 = vrot.slane %v479, 2
      %v481 = vmax.f32 %v479, %v480
      %v482 = vrot.slane %v481, 1
      %v483 = vmax.f32 %v481, %v482
      %v484 = vsel %vm462, %v223, -inf
      %v485 = vrot.slane %v484, 4
      %v486 = vmax.f32 %v484, %v485
      %v487 = vrot.slane %v486, 2
      %v488 = vmax.f32 %v486, %v487
      %v489 = vrot.slane %v488, 1
      %v490 = vmax.f32 %v488, %v489
      %v491 = vsel %vm462, %v224, -inf
      %v492 = vrot.slane %v491, 4
      %v493 = vmax.f32 %v491, %v492
      %v494 = vrot.slane %v493, 2
      %v495 = vmax.f32 %v493, %v494
      %v496 = vrot.slane %v495, 1
      %v497 = vmax.f32 %v495, %v496
      %v498 = vsel %vm462, %v225, -inf
      %v499 = vrot.slane %v498, 4
      %v500 = vmax.f32 %v498, %v499
      %v501 = vrot.slane %v500, 2
      %v502 = vmax.f32 %v500, %v501
      %v503 = vrot.slane %v502, 1
      %v504 = vmax.f32 %v502, %v503
      %v505 = vsel %vm462, %v226, -inf
      %v506 = vrot.slane %v505, 4
      %v507 = vmax.f32 %v505, %v506
      %v508 = vrot.slane %v507, 2
      %v509 = vmax.f32 %v507, %v508
      %v510 = vrot.slane %v509, 1
      %v511 = vmax.f32 %v509, %v510
      %v512 = vsel %vm462, %v227, -inf
      %v513 = vrot.slane %v512, 4
      %v514 = vmax.f32 %v512, %v513
      %v515 = vrot.slane %v514, 2
      %v516 = vmax.f32 %v514, %v515
      %v517 = vrot.slane %v516, 1
      %v518 = vmax.f32 %v516, %v517
      %v519 = vsel %vm462, %v228, -inf
      %v520 = vrot.slane %v519, 4
      %v521 = vmax.f32 %v519, %v520
      %v522 = vrot.slane %v521, 2
      %v523 = vmax.f32 %v521, %v522
      %v524 = vrot.slane %v523, 1
      %v525 = vmax.f32 %v523, %v524
      %v526 = vsel %vm462, %v229, -inf
      %v527 = vrot.slane %v526, 4
      %v528 = vmax.f32 %v526, %v527
      %v529 = vrot.slane %v528, 2
      %v530 = vmax.f32 %v528, %v529
      %v531 = vrot.slane %v530, 1
      %v532 = vmax.f32 %v530, %v531
      %v533 = vsel %vm462, %v230, -inf
      %v534 = vrot.slane %v533, 4
      %v535 = vmax.f32 %v533, %v534
      %v536 = vrot.slane %v535, 2
      %v537 = vmax.f32 %v535, %v536
      %v538 = vrot.slane %v537, 1
      %v539 = vmax.f32 %v537, %v538
      %v540 = vsel %vm462, %v231, -inf
      %v541 = vrot.slane %v540, 4
      %v542 = vmax.f32 %v540, %v541
      %v543 = vrot.slane %v542, 2
      %v544 = vmax.f32 %v542, %v543
      %v545 = vrot.slane %v544, 1
      %v546 = vmax.f32 %v544, %v545
      %v547 = vsel %vm462, %v232, -inf
      %v548 = vrot.slane %v547, 4
      %v549 = vmax.f32 %v547, %v548
      %v550 = vrot.slane %v549, 2
      %v551 = vmax.f32 %v549, %v550
      %v552 = vrot.slane %v551, 1
      %v553 = vmax.f32 %v551, %v552
      %v554 = vsel %vm462, %v233, -inf
      %v555 = vrot.slane %v554, 4
      %v556 = vmax.f32 %v554, %v555
      %v557 = vrot.slane %v556, 2
      %v558 = vmax.f32 %v556, %v557
      %v559 = vrot.slane %v558, 1
      %v560 = vmax.f32 %v558, %v559
      %v561 = vsel %vm462, %v234, -inf
      %v562 = vrot.slane %v561, 4
      %v563 = vmax.f32 %v561, %v562
      %v564 = vrot.slane %v563, 2
      %v565 = vmax.f32 %v563, %v564
      %v566 = vrot.slane %v565, 1
      %v567 = vmax.f32 %v565, %v566
      %v568 = vsel %vm462, %v235, -inf
      %v569 = vrot.slane %v568, 4
      %v570 = vmax.f32 %v568, %v569
      %v571 = vrot.slane %v570, 2
      %v572 = vmax.f32 %v570, %v571
      %v573 = vrot.slane %v572, 1
      %v574 = vmax.f32 %v572, %v573
      %vm575 = vcmask 1040384
      %v576 = vsel %vm575, %v243, %v356
      %v577 = vsel %vm575, %v250, %v363
      %v578 = vsel %vm575, %v257, %v370
      %v579 = vsel %vm575, %v264, %v377
      %v580 = vsel %vm575, %v271, %v384
      %v581 = vsel %vm575, %v278, %v391
      %v582 = vsel %vm575, %v285, %v398
      %v583 = vsel %vm575, %v292, %v405
      %v584 = vsel %vm575, %v299, %v412
      %v585 = vsel %vm575, %v306, %v419
      %v586 = vsel %vm575, %v313, %v426
      %v587 = vsel %vm575, %v320, %v433
      %v588 = vsel %vm575, %v327, %v440
      %v589 = vsel %vm575, %v334, %v447
      %v590 = vsel %vm575, %v341, %v454
      %v591 = vsel %vm575, %v348, %v461
      %vm592 = vcmask 1041408
      %v593 = vsel %vm592, %v576, %v469
      %v594 = vsel %vm592, %v577, %v476
      %v595 = vsel %vm592, %v578, %v483
      %v596 = vsel %vm592, %v579, %v490
      %v597 = vsel %vm592, %v580, %v497
      %v598 = vsel %vm592, %v581, %v504
      %v599 = vsel %vm592, %v582, %v511
      %v600 = vsel %vm592, %v583, %v518
      %v601 = vsel %vm592, %v584, %v525
      %v602 = vsel %vm592, %v585, %v532
      %v603 = vsel %vm592, %v586, %v539
      %v604 = vsel %vm592, %v587, %v546
      %v605 = vsel %vm592, %v588, %v553
      %v606 = vsel %vm592, %v589, %v560
      %v607 = vsel %vm592, %v590, %v567
      %v608 = vsel %vm592, %v591, %v574
      %v609 = vmax.f32 %v593, 0.0
      %v610 = vmax.f32 %v594, 0.0
      %v611 = vmax.f32 %v595, 0.0
      %v612 = vmax.f32 %v596, 0.0
      %v613 = vmax.f32 %v597, 0.0
      %v614 = vmax.f32 %v598, 0.0
      %v615 = vmax.f32 %v599, 0.0
      %v616 = vmax.f32 %v600, 0.0
      %v617 = vmax.f32 %v601, 0.0
      %v618 = vmax.f32 %v602, 0.0
      %v619 = vmax.f32 %v603, 0.0
      %v620 = vmax.f32 %v604, 0.0
      %v621 = vmax.f32 %v605, 0.0
      %v622 = vmax.f32 %v606, 0.0
      %v623 = vmax.f32 %v607, 0.0
      %v624 = vmax.f32 %v608, 0.0
      %vm625 = vcmask 18440
      %v626 = vsel %vm625, %v593, -inf
      %627 = vmax.xlane.f32.xlu0 %v626
      %v628 = vpop.xlane.xlu0 %627
      %v629 = vsel %vm625, %v594, -inf
      %630 = vmax.xlane.f32.xlu0 %v629
      %v631 = vpop.xlane.xlu0 %630
      %v632 = vsel %vm625, %v595, -inf
      %633 = vmax.xlane.f32.xlu0 %v632
      %v634 = vpop.xlane.xlu0 %633
      %v635 = vsel %vm625, %v596, -inf
      %636 = vmax.xlane.f32.xlu0 %v635
      %v637 = vpop.xlane.xlu0 %636
      %v638 = vsel %vm625, %v597, -inf
      %639 = vmax.xlane.f32.xlu0 %v638
      %v640 = vpop.xlane.xlu0 %639
      %v641 = vsel %vm625, %v598, -inf
      %642 = vmax.xlane.f32.xlu0 %v641
      %v643 = vpop.xlane.xlu0 %642
      %v644 = vsel %vm625, %v599, -inf
      %645 = vmax.xlane.f32.xlu0 %v644
      %v646 = vpop.xlane.xlu0 %645
      %v647 = vsel %vm625, %v600, -inf
      %648 = vmax.xlane.f32.xlu0 %v647
      %v649 = vpop.xlane.xlu0 %648
      %v650 = vsel %vm625, %v601, -inf
      %651 = vmax.xlane.f32.xlu0 %v650
      %v652 = vpop.xlane.xlu0 %651
      %v653 = vsel %vm625, %v602, -inf
      %654 = vmax.xlane.f32.xlu0 %v653
      %v655 = vpop.xlane.xlu0 %654
      %v656 = vsel %vm625, %v603, -inf
      %657 = vmax.xlane.f32.xlu0 %v656
      %v658 = vpop.xlane.xlu0 %657
      %v659 = vsel %vm625, %v604, -inf
      %660 = vmax.xlane.f32.xlu0 %v659
      %v661 = vpop.xlane.xlu0 %660
      %v662 = vsel %vm625, %v605, -inf
      %663 = vmax.xlane.f32.xlu0 %v662
      %v664 = vpop.xlane.xlu0 %663
      %v665 = vsel %vm625, %v606, -inf
      %666 = vmax.xlane.f32.xlu0 %v665
      %v667 = vpop.xlane.xlu0 %666
      %v668 = vsel %vm625, %v607, -inf
      %669 = vmax.xlane.f32.xlu0 %v668
      %v670 = vpop.xlane.xlu0 %669
      %v671 = vsel %vm625, %v608, -inf
      %672 = vmax.xlane.f32.xlu0 %v671
      %v673 = vpop.xlane.xlu0 %672
      %vm674 = vcmask 34840
      %v675 = vsel %vm674, %v593, -inf
      %676 = vmax.xlane.f32.xlu0 %v675
      %v677 = vpop.xlane.xlu0 %676
      %v678 = vsel %vm674, %v594, -inf
      %679 = vmax.xlane.f32.xlu0 %v678
      %v680 = vpop.xlane.xlu0 %679
      %v681 = vsel %vm674, %v595, -inf
      %682 = vmax.xlane.f32.xlu0 %v681
      %v683 = vpop.xlane.xlu0 %682
      %v684 = vsel %vm674, %v596, -inf
      %685 = vmax.xlane.f32.xlu0 %v684
      %v686 = vpop.xlane.xlu0 %685
      %v687 = vsel %vm674, %v597, -inf
      %688 = vmax.xlane.f32.xlu0 %v687
      %v689 = vpop.xlane.xlu0 %688
      %v690 = vsel %vm674, %v598, -inf
      %691 = vmax.xlane.f32.xlu0 %v690
      %v692 = vpop.xlane.xlu0 %691
      %v693 = vsel %vm674, %v599, -inf
      %694 = vmax.xlane.f32.xlu0 %v693
      %v695 = vpop.xlane.xlu0 %694
      %v696 = vsel %vm674, %v600, -inf
      %697 = vmax.xlane.f32.xlu0 %v696
      %v698 = vpop.xlane.xlu0 %697
      %v699 = vsel %vm674, %v601, -inf
      %700 = vmax.xlane.f32.xlu0 %v699
      %v701 = vpop.xlane.xlu0 %700
      %v702 = vsel %vm674, %v602, -inf
      %703 = vmax.xlane.f32.xlu0 %v702
      %v704 = vpop.xlane.xlu0 %703
      %v705 = vsel %vm674, %v603, -inf
      %706 = vmax.xlane.f32.xlu0 %v705
      %v707 = vpop.xlane.xlu0 %706
      %v708 = vsel %vm674, %v604, -inf
      %709 = vmax.xlane.f32.xlu0 %v708
      %v710 = vpop.xlane.xlu0 %709
      %v711 = vsel %vm674, %v605, -inf
      %712 = vmax.xlane.f32.xlu0 %v711
      %v713 = vpop.xlane.xlu0 %712
      %v714 = vsel %vm674, %v606, -inf
      %715 = vmax.xlane.f32.xlu0 %v714
      %v716 = vpop.xlane.xlu0 %715
      %v717 = vsel %vm674, %v607, -inf
      %718 = vmax.xlane.f32.xlu0 %v717
      %v719 = vpop.xlane.xlu0 %718
      %v720 = vsel %vm674, %v608, -inf
      %721 = vmax.xlane.f32.xlu0 %v720
      %v722 = vpop.xlane.xlu0 %721
      %vm723 = vcmask 51240
      %v724 = vsel %vm723, %v593, -inf
      %725 = vmax.xlane.f32.xlu0 %v724
      %v726 = vpop.xlane.xlu0 %725
      %v727 = vsel %vm723, %v594, -inf
      %728 = vmax.xlane.f32.xlu0 %v727
      %v729 = vpop.xlane.xlu0 %728
      %v730 = vsel %vm723, %v595, -inf
      %731 = vmax.xlane.f32.xlu0 %v730
      %v732 = vpop.xlane.xlu0 %731
      %v733 = vsel %vm723, %v596, -inf
      %734 = vmax.xlane.f32.xlu0 %v733
      %v735 = vpop.xlane.xlu0 %734
      %v736 = vsel %vm723, %v597, -inf
      %737 = vmax.xlane.f32.xlu0 %v736
      %v738 = vpop.xlane.xlu0 %737
      %v739 = vsel %vm723, %v598, -inf
      %740 = vmax.xlane.f32.xlu0 %v739
      %v741 = vpop.xlane.xlu0 %740
      %v742 = vsel %vm723, %v599, -inf
      %743 = vmax.xlane.f32.xlu0 %v742
      %v744 = vpop.xlane.xlu0 %743
      %v745 = vsel %vm723, %v600, -inf
      %746 = vmax.xlane.f32.xlu0 %v745
      %v747 = vpop.xlane.xlu0 %746
      %v748 = vsel %vm723, %v601, -inf
      %749 = vmax.xlane.f32.xlu0 %v748
      %v750 = vpop.xlane.xlu0 %749
      %v751 = vsel %vm723, %v602, -inf
      %752 = vmax.xlane.f32.xlu0 %v751
      %v753 = vpop.xlane.xlu0 %752
      %v754 = vsel %vm723, %v603, -inf
      %755 = vmax.xlane.f32.xlu0 %v754
      %v756 = vpop.xlane.xlu0 %755
      %v757 = vsel %vm723, %v604, -inf
      %758 = vmax.xlane.f32.xlu0 %v757
      %v759 = vpop.xlane.xlu0 %758
      %v760 = vsel %vm723, %v605, -inf
      %761 = vmax.xlane.f32.xlu0 %v760
      %v762 = vpop.xlane.xlu0 %761
      %v763 = vsel %vm723, %v606, -inf
      %764 = vmax.xlane.f32.xlu0 %v763
      %v765 = vpop.xlane.xlu0 %764
      %v766 = vsel %vm723, %v607, -inf
      %767 = vmax.xlane.f32.xlu0 %v766
      %v768 = vpop.xlane.xlu0 %767
      %v769 = vsel %vm723, %v608, -inf
      %770 = vmax.xlane.f32.xlu0 %v769
      %v771 = vpop.xlane.xlu0 %770
      %vm772 = vcmask 67640
      %v773 = vsel %vm772, %v593, -inf
      %774 = vmax.xlane.f32.xlu0 %v773
      %v775 = vpop.xlane.xlu0 %774
      %v776 = vsel %vm772, %v594, -inf
      %777 = vmax.xlane.f32.xlu0 %v776
      %v778 = vpop.xlane.xlu0 %777
      %v779 = vsel %vm772, %v595, -inf
      %780 = vmax.xlane.f32.xlu0 %v779
      %v781 = vpop.xlane.xlu0 %780
      %v782 = vsel %vm772, %v596, -inf
      %783 = vmax.xlane.f32.xlu0 %v782
      %v784 = vpop.xlane.xlu0 %783
      %v785 = vsel %vm772, %v597, -inf
      %786 = vmax.xlane.f32.xlu0 %v785
      %v787 = vpop.xlane.xlu0 %786
      %v788 = vsel %vm772, %v598, -inf
      %789 = vmax.xlane.f32.xlu0 %v788
      %v790 = vpop.xlane.xlu0 %789
      %v791 = vsel %vm772, %v599, -inf
      %792 = vmax.xlane.f32.xlu0 %v791
      %v793 = vpop.xlane.xlu0 %792
      %v794 = vsel %vm772, %v600, -inf
      %795 = vmax.xlane.f32.xlu0 %v794
      %v796 = vpop.xlane.xlu0 %795
      %v797 = vsel %vm772, %v601, -inf
      %798 = vmax.xlane.f32.xlu0 %v797
      %v799 = vpop.xlane.xlu0 %798
      %v800 = vsel %vm772, %v602, -inf
      %801 = vmax.xlane.f32.xlu0 %v800
      %v802 = vpop.xlane.xlu0 %801
      %v803 = vsel %vm772, %v603, -inf
      %804 = vmax.xlane.f32.xlu0 %v803
      %v805 = vpop.xlane.xlu0 %804
      %v806 = vsel %vm772, %v604, -inf
      %807 = vmax.xlane.f32.xlu0 %v806
      %v808 = vpop.xlane.xlu0 %807
      %v809 = vsel %vm772, %v605, -inf
      %810 = vmax.xlane.f32.xlu0 %v809
      %v811 = vpop.xlane.xlu0 %810
      %v812 = vsel %vm772, %v606, -inf
      %813 = vmax.xlane.f32.xlu0 %v812
      %v814 = vpop.xlane.xlu0 %813
      %v815 = vsel %vm772, %v607, -inf
      %816 = vmax.xlane.f32.xlu0 %v815
      %v817 = vpop.xlane.xlu0 %816
      %v818 = vsel %vm772, %v608, -inf
      %819 = vmax.xlane.f32.xlu0 %v818
      %v820 = vpop.xlane.xlu0 %819
      %vm821 = vcmask 7168
      %v822 = vsel %vm821, %v609, %v628
      %v823 = vsel %vm821, %v610, %v631
      %v824 = vsel %vm821, %v611, %v634
      %v825 = vsel %vm821, %v612, %v637
      %v826 = vsel %vm821, %v613, %v640
      %v827 = vsel %vm821, %v614, %v643
      %v828 = vsel %vm821, %v615, %v646
      %v829 = vsel %vm821, %v616, %v649
      %v830 = vsel %vm821, %v617, %v652
      %v831 = vsel %vm821, %v618, %v655
      %v832 = vsel %vm821, %v619, %v658
      %v833 = vsel %vm821, %v620, %v661
      %v834 = vsel %vm821, %v621, %v664
      %v835 = vsel %vm821, %v622, %v667
      %v836 = vsel %vm821, %v623, %v670
      %v837 = vsel %vm821, %v624, %v673
      %vm838 = vcmask 15360
      %v839 = vsel %vm838, %v822, %v677
      %v840 = vsel %vm838, %v823, %v680
      %v841 = vsel %vm838, %v824, %v683
      %v842 = vsel %vm838, %v825, %v686
      %v843 = vsel %vm838, %v826, %v689
      %v844 = vsel %vm838, %v827, %v692
      %v845 = vsel %vm838, %v828, %v695
      %v846 = vsel %vm838, %v829, %v698
      %v847 = vsel %vm838, %v830, %v701
      %v848 = vsel %vm838, %v831, %v704
      %v849 = vsel %vm838, %v832, %v707
      %v850 = vsel %vm838, %v833, %v710
      %v851 = vsel %vm838, %v834, %v713
      %v852 = vsel %vm838, %v835, %v716
      %v853 = vsel %vm838, %v836, %v719
      %v854 = vsel %vm838, %v837, %v722
      %vm855 = vcmask 23552
      %v856 = vsel %vm855, %v839, %v726
      %v857 = vsel %vm855, %v840, %v729
      %v858 = vsel %vm855, %v841, %v732
      %v859 = vsel %vm855, %v842, %v735
      %v860 = vsel %vm855, %v843, %v738
      %v861 = vsel %vm855, %v844, %v741
      %v862 = vsel %vm855, %v845, %v744
      %v863 = vsel %vm855, %v846, %v747
      %v864 = vsel %vm855, %v847, %v750
      %v865 = vsel %vm855, %v848, %v753
      %v866 = vsel %vm855, %v849, %v756
      %v867 = vsel %vm855, %v850, %v759
      %v868 = vsel %vm855, %v851, %v762
      %v869 = vsel %vm855, %v852, %v765
      %v870 = vsel %vm855, %v853, %v768
      %v871 = vsel %vm855, %v854, %v771
      %vm872 = vcmask 31744
      %v873 = vsel %vm872, %v856, %v775
      %v874 = vsel %vm872, %v857, %v778
      %v875 = vsel %vm872, %v858, %v781
      %v876 = vsel %vm872, %v859, %v784
      %v877 = vsel %vm872, %v860, %v787
      %v878 = vsel %vm872, %v861, %v790
      %v879 = vsel %vm872, %v862, %v793
      %v880 = vsel %vm872, %v863, %v796
      %v881 = vsel %vm872, %v864, %v799
      %v882 = vsel %vm872, %v865, %v802
      %v883 = vsel %vm872, %v866, %v805
      %v884 = vsel %vm872, %v867, %v808
      %v885 = vsel %vm872, %v868, %v811
      %v886 = vsel %vm872, %v869, %v814
      %v887 = vsel %vm872, %v870, %v817
      %v888 = vsel %vm872, %v871, %v820
      %vm889 = vcmask 34816
      %890 = vst.msk [vmem:[%s161] sm:$0x7] %vm889, %v873
      %891 = vst.msk [vmem:[%s161 + $0x4] sm:$0x7] %vm889, %v874
      %892 = vst.msk [vmem:[%s161 + $0x8] sm:$0x7] %vm889, %v875
      %893 = vst.msk [vmem:[%s161 + $0xc] sm:$0x7] %vm889, %v876
      %894 = vst.msk [vmem:[%s161 + $0x10] sm:$0x7] %vm889, %v877
      %895 = vst.msk [vmem:[%s161 + $0x14] sm:$0x7] %vm889, %v878
      %896 = vst.msk [vmem:[%s161 + $0x18] sm:$0x7] %vm889, %v879
      %897 = vst.msk [vmem:[%s161 + $0x1c] sm:$0x7] %vm889, %v880
      %898 = vst.msk [vmem:[%s161 + $0x20] sm:$0x7] %vm889, %v881
      %899 = vst.msk [vmem:[%s161 + $0x24] sm:$0x7] %vm889, %v882
      %900 = vst.msk [vmem:[%s161 + $0x28] sm:$0x7] %vm889, %v883
      %901 = vst.msk [vmem:[%s161 + $0x2c] sm:$0x7] %vm889, %v884
      %902 = vst.msk [vmem:[%s161 + $0x30] sm:$0x7] %vm889, %v885
      %903 = vst.msk [vmem:[%s161 + $0x34] sm:$0x7] %vm889, %v886
      %904 = vst.msk [vmem:[%s161 + $0x38] sm:$0x7] %vm889, %v887
      %905 = vst.msk [vmem:[%s161 + $0x3c] sm:$0x7] %vm889, %v888
      %s906 = smul.u32 4, %s16
      %s907 = smul.u32 4, %s17
      %p908 = scmp.lt.s32.totalorder %s906, 7
      %s909 = scalar_select %p908, %s906, 7
      %p910 = scmp.lt.s32.totalorder %s907, 3
      %s911 = scalar_select %p910, %s907, 3
      %s912 = smul.addr %s909, 4
      %s913 = sadd.s32 %s911, %s912
      %s914 = smul.addr %s913, 4
      %s915 = scalar_lea.vmem %s1, %s914
      // Predicated region
      $region25: #{tpu_custom_call.1} parent=23 // pred_check
        %p916 = pneg %p72
      $region26: #{tpu_custom_call.1} parent=23 // pred_check_branch
        %918 = sbr.rel (%p916) target = $region28
      $region27: #{tpu_custom_call.1} parent=23 // pred_region
        %s919 = smul.u32 4, %s16
        %s920 = smul.u32 4, %s17
      $region28: #{tpu_custom_call.1} parent=23 // pred_fallthru
        _
    $region24: #{tpu_custom_call.1} parent=5 // pred_fallthru
      _
    %p921 = scmp.le.s32.totalorder 2, %s7
    // Predicated region
    $region29: #{tpu_custom_call.1} parent=5 // pred_check
      %p922 = pneg %p921
    $region30: #{tpu_custom_call.1} parent=5 // pred_check_branch
      %924 = sbr.rel (%p922) target = $region32
    $region31: #{tpu_custom_call.1} parent=5 // pred_region
      %s925 = ssub.s32 %s7, 2
      // Predicated region
      $region33: #{tpu_custom_call.1} parent=31 // pred_check
        %p926 = pneg %p78
      $region34: #{tpu_custom_call.1} parent=31 // pred_check_branch
        %928 = sbr.rel (%p926) target = $region36
      $region35: #{tpu_custom_call.1} parent=31 // pred_region
        %s929 = smul.u32 4, %s18
        %s930 = smul.u32 4, %s19
        %p931 = scmp.lt.s32.totalorder %s929, 7
        %s932 = scalar_select %p931, %s929, 7
        %p933 = scmp.lt.s32.totalorder %s930, 3
        %s934 = scalar_select %p933, %s930, 3
        %s935 = smul.addr %s932, 4
        %s936 = sadd.s32 %s934, %s935
        %s937 = smul.addr %s936, 4
        %s938 = scalar_lea.vmem %s1, %s937
      $region36: #{tpu_custom_call.1} parent=31 // pred_fallthru
        _
    $region32: #{tpu_custom_call.1} parent=5 // pred_fallthru
      _
  $region6: #{tpu_custom_call.1} parent=0 // loop_footer
    %s11 = sadd.s32 1, %s7
  $region7: #{tpu_custom_call.1} parent=0 // loop_footer_branch
    %6 = sbr.rel target = $region3
  $region8: #{tpu_custom_call.1} parent=0 // loop_exit
    _

</llo_original>
